<compile_context>
chip_gen: v6e
topology: v6e:2x2x1
jax: 0.10.0
libtpu: 0.0.40
codegen_flags: <defaults>
</compile_context>

<pallas_src>
import functools

import jax
import jax.numpy as jnp
from jax import lax
from jax.experimental import pallas as pl
from jax.experimental.pallas import tpu as pltpu

_IGNORE_INDEX = -100  # torch.nn.CrossEntropyLoss default


def _ce_kernel(pred_ref, labels_ref, out_ref, m_sc, l_sc, p_sc, *,
               n_rows, n_classes, tile_n, tile_c,
               mask_class_tail, mask_row_tail):
    i = pl.program_id(0)          # row-tile index   ("parallel")
    k = pl.program_id(1)          # class-tile index ("arbitrary" reduction)
    nk = pl.num_programs(1)

    @pl.when(k == 0)
    def _init():
        m_sc[...] = jnp.full_like(m_sc, -jnp.inf)
        l_sc[...] = jnp.zeros_like(l_sc)
        p_sc[...] = jnp.zeros_like(p_sc)

    x = pred_ref[...].astype(jnp.float32)              # (tile_n, tile_c)
    labels = labels_ref[...]                           # (tile_n, 1) int32

    # global class-column index of this tile
    col = k * tile_c + lax.broadcasted_iota(jnp.int32, (tile_n, tile_c), 1)
    if mask_class_tail:
        # kill the out-of-range class columns of the last (overhanging) tile
        x = jnp.where(col < n_classes, x, -1e30)

    # ---- online (streaming) logsumexp across class tiles ----
    m_prev = m_sc[...]
    m_new = jnp.maximum(m_prev, jnp.max(x, axis=-1, keepdims=True))     # (tile_n, 1)
    l_sc[...] = jnp.exp(m_prev - m_new) * l_sc[...] + \
        jnp.sum(jnp.exp(x - m_new), axis=-1, keepdims=True)
    m_sc[...] = m_new

    # ---- gather pred[i, labels[i]] via one-hot compare (no dynamic gather on TPU) ----
    p_sc[...] += jnp.sum(jnp.where(col == labels, x, 0.0), axis=-1, keepdims=True)

    @pl.when(k == nk - 1)
    def _finalize():
        lse = m_sc[...] + jnp.log(l_sc[...])            # (tile_n, 1)
        valid = labels != _IGNORE_INDEX
        if mask_row_tail:
            row = i * tile_n + lax.broadcasted_iota(jnp.int32, (tile_n, 1), 0)
            valid = valid & (row < n_rows)
        # per-row loss; masked (padded / ignored) rows contribute exactly 0
        out_ref[...] = jnp.where(valid, lse - p_sc[...], 0.0)


def _round_up(x, m):
    return ((x + m - 1) // m) * m


def cross_entropy_loss(pred, labels):
    """pred: (N, C) float logits (f32 or bf16), labels: (N,) int class ids -> scalar f32."""
    n, c = pred.shape
    labels_i32 = labels.astype(jnp.int32).reshape(n, 1)   # labels.long() equivalent

    # ---- tile sizing (conservative: fits v5e/v6e/v7x VMEM with double buffering) ----
    max_tile_c = 2048
    tile_c = c if c <= max_tile_c else max_tile_c          # full C when small, else stream
    max_tile_elems = 256 * 1024                            # ~1 MiB of f32 intermediates
    tile_n = max(8, min(1024, max_tile_elems // tile_c))
    tile_n = (tile_n // 8) * 8
    tile_n = min(tile_n, _round_up(n, 8))

    num_row_tiles = (n + tile_n - 1) // tile_n
    num_cls_tiles = (c + tile_c - 1) // tile_c
    n_pad = num_row_tiles * tile_n

    kernel = functools.partial(
        _ce_kernel,
        n_rows=n, n_classes=c, tile_n=tile_n, tile_c=tile_c,
        mask_class_tail=(c % tile_c != 0),
        mask_row_tail=(n % tile_n != 0))

    itemsize = jnp.dtype(pred.dtype).itemsize
    cost = pl.CostEstimate(
        flops=3 * n * c,
        transcendentals=n * c,
        bytes_accessed=n * c * itemsize + n * 4 + n_pad * 4)

    per_row = pl.pallas_call(
        kernel,
        out_shape=jax.ShapeDtypeStruct((n_pad, 1), jnp.float32),
        grid_spec=pltpu.PrefetchScalarGridSpec(
            num_scalar_prefetch=0,
            grid=(num_row_tiles, num_cls_tiles),
            in_specs=[
                pl.BlockSpec((tile_n, tile_c), lambda i, k: (i, k)),   # logits tile
                pl.BlockSpec((tile_n, 1), lambda i, k: (i, 0)),        # labels tile
            ],
            out_specs=pl.BlockSpec((tile_n, 1), lambda i, k: (i, 0)),  # per-row losses
            scratch_shapes=[
                pltpu.VMEM((tile_n, 1), jnp.float32),   # running max  m
                pltpu.VMEM((tile_n, 1), jnp.float32),   # running sum  l
                pltpu.VMEM((tile_n, 1), jnp.float32),   # picked-logit accumulator
            ],
        ),
        compiler_params=pltpu.CompilerParams(
            dimension_semantics=("parallel", "arbitrary"),
            vmem_limit_bytes=48 * 1024 * 1024),
        cost_estimate=cost,
    )(pred, labels_i32)

    # mean over non-ignored targets (matches torch default 'mean' + ignore_index=-100)
    denom = jnp.sum(labels_i32[:, 0] != _IGNORE_INDEX).astype(jnp.float32)
    return jnp.sum(per_row) / denom


if __name__ == "__main__":
    key = jax.random.PRNGKey(0)
    k1, k2 = jax.random.split(key)

    N, C = 8, 128
    pred = jax.random.normal(k1, (N, C), dtype=jnp.float32)
    labels = jax.random.randint(k2, (N,), 0, C, dtype=jnp.int32)

    loss = cross_entropy_loss(pred, labels)
    jax.block_until_ready(loss)

    # pure-JAX reference (same semantics as torch CrossEntropyLoss, mean reduction)
    ref = jnp.mean(
        jax.nn.logsumexp(pred, axis=-1) - pred[jnp.arange(N), labels]
    )
    assert jnp.allclose(loss, ref, atol=1e-5, rtol=1e-5), (loss, ref)

    print("KERNEL_OK")
</pallas_src>

<mosaic_0001>
module attributes {stable_mosaic.version = 11 : i64} {
  func.func @_ce_kernel(%arg0: i32, %arg1: i32, %arg2: memref<8x128xf32, #tpu.memory_space<vmem>>, %arg3: memref<8x1xi32, #tpu.memory_space<vmem>>, %arg4: memref<8x1xf32, #tpu.memory_space<vmem>>, %arg5: memref<8x1xf32, #tpu.memory_space<vmem>>, %arg6: memref<8x1xf32, #tpu.memory_space<vmem>>, %arg7: memref<8x1xf32, #tpu.memory_space<vmem>>) attributes {dimension_semantics = [#tpu.dimension_semantics<parallel>, #tpu.dimension_semantics<arbitrary>], iteration_bounds = array<i64: 1, 1>, scalar_prefetch = 0 : i64, scratch_operands = 3 : i64, tpu.core_type = #tpu.core_type<tc>, window_params = [{transform_indices = @transform_0, window_bounds = array<i64: 8, 128>}, {transform_indices = @transform_1, window_bounds = array<i64: 8, 1>}, {transform_indices = @transform_2, window_bounds = array<i64: 8, 1>}]} {
    %c0_i32 = arith.constant 0 : i32
    %0 = arith.cmpi eq, %arg1, %c0_i32 : i32
    %1 = arith.extui %0 : i1 to i32
    %c0_i32_0 = arith.constant 0 : i32
    %2 = arith.cmpi ne, %1, %c0_i32_0 : i32
    scf.if %2 {
      %cst_21 = arith.constant 0xFF800000 : f32
      %37 = vector.broadcast %cst_21 : f32 to vector<8x1xf32>
      %c0_22 = arith.constant 0 : index
      %c0_23 = arith.constant 0 : index
      %38 = vector.load %arg5[%c0_22, %c0_23] : memref<8x1xf32, #tpu.memory_space<vmem>>, vector<8x1xf32>
      tpu.vector_store %arg5[%c0_22, %c0_23], %37 {strides = array<i32>} : memref<8x1xf32, #tpu.memory_space<vmem>>, vector<8x1xf32>,
      %cst_24 = arith.constant 0.000000e+00 : f32
      %39 = vector.broadcast %cst_24 : f32 to vector<8x1xf32>
      %c0_25 = arith.constant 0 : index
      %c0_26 = arith.constant 0 : index
      %40 = vector.load %arg6[%c0_25, %c0_26] : memref<8x1xf32, #tpu.memory_space<vmem>>, vector<8x1xf32>
      tpu.vector_store %arg6[%c0_25, %c0_26], %39 {strides = array<i32>} : memref<8x1xf32, #tpu.memory_space<vmem>>, vector<8x1xf32>,
      %cst_27 = arith.constant 0.000000e+00 : f32
      %41 = vector.broadcast %cst_27 : f32 to vector<8x1xf32>
      %c0_28 = arith.constant 0 : index
      %c0_29 = arith.constant 0 : index
      %42 = vector.load %arg7[%c0_28, %c0_29] : memref<8x1xf32, #tpu.memory_space<vmem>>, vector<8x1xf32>
      tpu.vector_store %arg7[%c0_28, %c0_29], %41 {strides = array<i32>} : memref<8x1xf32, #tpu.memory_space<vmem>>, vector<8x1xf32>,
    } else {
    }
    %c0 = arith.constant 0 : index
    %c0_1 = arith.constant 0 : index
    %3 = vector.load %arg2[%c0, %c0_1] : memref<8x128xf32, #tpu.memory_space<vmem>>, vector<8x128xf32>
    %c0_2 = arith.constant 0 : index
    %c0_3 = arith.constant 0 : index
    %4 = vector.load %arg3[%c0_2, %c0_3] : memref<8x1xi32, #tpu.memory_space<vmem>>, vector<8x1xi32>
    %c128_i32 = arith.constant 128 : i32
    %5 = arith.muli %arg1, %c128_i32 : i32
    %6 = tpu.iota {dimensions = array<i32: 1>} : vector<8x128xi32>
    %7 = vector.broadcast %5 : i32 to vector<8x128xi32>
    %8 = arith.addi %7, %6 : vector<8x128xi32>
    %c0_4 = arith.constant 0 : index
    %c0_5 = arith.constant 0 : index
    %9 = vector.load %arg5[%c0_4, %c0_5] : memref<8x1xf32, #tpu.memory_space<vmem>>, vector<8x1xf32>
    %cst = arith.constant dense<0xFF800000> : vector<8xf32>
    %10 = vector.multi_reduction <maximumf>, %3, %cst [1] : vector<8x128xf32> to vector<8xf32>
    %11 = vector.shape_cast %10 : vector<8xf32> to vector<8x1xf32>
    %12 = arith.maximumf %9, %11 : vector<8x1xf32>
    %13 = arith.subf %9, %12 : vector<8x1xf32>
    %14 = math.exp %13 : vector<8x1xf32>
    %c0_6 = arith.constant 0 : index
    %c0_7 = arith.constant 0 : index
    %15 = vector.load %arg6[%c0_6, %c0_7] : memref<8x1xf32, #tpu.memory_space<vmem>>, vector<8x1xf32>
    %16 = arith.mulf %14, %15 : vector<8x1xf32>
    %17 = vector.broadcast %12 : vector<8x1xf32> to vector<8x128xf32>
    %18 = arith.subf %3, %17 : vector<8x128xf32>
    %19 = math.exp %18 : vector<8x128xf32>
    %cst_8 = arith.constant dense<0.000000e+00> : vector<8xf32>
    %20 = vector.multi_reduction <add>, %19, %cst_8 [1] : vector<8x128xf32> to vector<8xf32>
    %21 = vector.shape_cast %20 : vector<8xf32> to vector<8x1xf32>
    %22 = arith.addf %16, %21 : vector<8x1xf32>
    %c0_9 = arith.constant 0 : index
    %c0_10 = arith.constant 0 : index
    %23 = vector.load %arg6[%c0_9, %c0_10] : memref<8x1xf32, #tpu.memory_space<vmem>>, vector<8x1xf32>
    tpu.vector_store %arg6[%c0_9, %c0_10], %22 {strides = array<i32>} : memref<8x1xf32, #tpu.memory_space<vmem>>, vector<8x1xf32>,
    %c0_11 = arith.constant 0 : index
    %c0_12 = arith.constant 0 : index
    %24 = vector.load %arg5[%c0_11, %c0_12] : memref<8x1xf32, #tpu.memory_space<vmem>>, vector<8x1xf32>
    tpu.vector_store %arg5[%c0_11, %c0_12], %12 {strides = array<i32>} : memref<8x1xf32, #tpu.memory_space<vmem>>, vector<8x1xf32>,
    %c0_13 = arith.constant 0 : index
    %c0_14 = arith.constant 0 : index
    %25 = vector.load %arg7[%c0_13, %c0_14] : memref<8x1xf32, #tpu.memory_space<vmem>>, vector<8x1xf32>
    %26 = vector.broadcast %4 : vector<8x1xi32> to vector<8x128xi32>
    %27 = arith.cmpi eq, %8, %26 : vector<8x128xi32>
    %cst_15 = arith.constant 0.000000e+00 : f32
    %28 = vector.broadcast %cst_15 : f32 to vector<8x128xf32>
    %29 = arith.select %27, %3, %28 : vector<8x128xi1>, vector<8x128xf32>
    %cst_16 = arith.constant dense<0.000000e+00> : vector<8xf32>
    %30 = vector.multi_reduction <add>, %29, %cst_16 [1] : vector<8x128xf32> to vector<8xf32>
    %31 = vector.shape_cast %30 : vector<8xf32> to vector<8x1xf32>
    %32 = arith.addf %25, %31 : vector<8x1xf32>
    %c0_17 = arith.constant 0 : index
    %c0_18 = arith.constant 0 : index
    %33 = vector.load %arg7[%c0_17, %c0_18] : memref<8x1xf32, #tpu.memory_space<vmem>>, vector<8x1xf32>
    tpu.vector_store %arg7[%c0_17, %c0_18], %32 {strides = array<i32>} : memref<8x1xf32, #tpu.memory_space<vmem>>, vector<8x1xf32>,
    %c0_i32_19 = arith.constant 0 : i32
    %34 = arith.cmpi eq, %arg1, %c0_i32_19 : i32
    %35 = arith.extui %34 : i1 to i32
    %c0_i32_20 = arith.constant 0 : i32
    %36 = arith.cmpi ne, %35, %c0_i32_20 : i32
    scf.if %36 {
      %c0_21 = arith.constant 0 : index
      %c0_22 = arith.constant 0 : index
      %37 = vector.load %arg5[%c0_21, %c0_22] : memref<8x1xf32, #tpu.memory_space<vmem>>, vector<8x1xf32>
      %c0_23 = arith.constant 0 : index
      %c0_24 = arith.constant 0 : index
      %38 = vector.load %arg6[%c0_23, %c0_24] : memref<8x1xf32, #tpu.memory_space<vmem>>, vector<8x1xf32>
      %39 = math.log %38 : vector<8x1xf32>
      %40 = arith.addf %37, %39 : vector<8x1xf32>
      %c-100_i32 = arith.constant -100 : i32
      %41 = vector.broadcast %c-100_i32 : i32 to vector<8x1xi32>
      %42 = arith.cmpi ne, %4, %41 : vector<8x1xi32>
      %c0_25 = arith.constant 0 : index
      %c0_26 = arith.constant 0 : index
      %43 = vector.load %arg7[%c0_25, %c0_26] : memref<8x1xf32, #tpu.memory_space<vmem>>, vector<8x1xf32>
      %44 = arith.subf %40, %43 : vector<8x1xf32>
      %cst_27 = arith.constant 0.000000e+00 : f32
      %45 = vector.broadcast %cst_27 : f32 to vector<8x1xf32>
      %46 = arith.select %42, %44, %45 : vector<8x1xi1>, vector<8x1xf32>
      %c0_28 = arith.constant 0 : index
      %c0_29 = arith.constant 0 : index
      %47 = vector.load %arg4[%c0_28, %c0_29] : memref<8x1xf32, #tpu.memory_space<vmem>>, vector<8x1xf32>
      tpu.vector_store %arg4[%c0_28, %c0_29], %46 {strides = array<i32>} : memref<8x1xf32, #tpu.memory_space<vmem>>, vector<8x1xf32>,
    } else {
    }
    return
  }
  func.func @transform_0(%arg0: i32, %arg1: i32) -> (i32, i32) {
    %c0_i32 = arith.constant 0 : i32
    return %arg0, %arg1 : i32, i32
  }
  func.func @transform_1(%arg0: i32, %arg1: i32) -> (i32, i32) {
    %c0_i32 = arith.constant 0 : i32
    %c0_i32_0 = arith.constant 0 : i32
    return %arg0, %c0_i32 : i32, i32
  }
  func.func @transform_2(%arg0: i32, %arg1: i32) -> (i32, i32) {
    %c0_i32 = arith.constant 0 : i32
    %c0_i32_0 = arith.constant 0 : i32
    return %arg0, %c0_i32 : i32, i32
  }
}

</mosaic_0001>

<llo_original>
// kernel: tpu_custom_call.1
$region0: #{tpu_custom_call.1}
  #allocation0 [shape = 'u32[]', space=smem, size = 0x4, offset = 0x4, fixed_abs, tag = 'smem constant byte address 0x4 - core index']
  #allocation1 [shape = 'u32[144,128]{1,0:T(1,128)}', space=vmem, size = 0x12000, scoped, tag = 'internal scratch']
  #allocation2 [shape = 'f32[8,1]{1,0:T(8,128)}', space=vmem, size = 0x1000, scoped, tag = 'scratch operand']
  #allocation3 [shape = 'f32[8,1]{1,0:T(8,128)}', space=vmem, size = 0x1000, scoped, tag = 'scratch operand']
  #allocation4 [shape = 'f32[8,1]{1,0:T(8,128)}', space=vmem, size = 0x1000, scoped, tag = 'scratch operand']
  %s0 = inlined_call_operand.vmem [shape: f32[8,128], index: 0, kind: input, shape index: {}]
  %s1 = inlined_call_operand.vmem [shape: s32[8,1], index: 1, kind: input, shape index: {}]
  %s2 = inlined_call_operand.vmem [shape: f32[8,1], index: 2, kind: output, shape index: {}]
  %s3 = sld [smem:[#allocation0]]
  $region26: #{tpu_custom_call.1} parent=0
    _
  %s5 = ssub.s32 1, %s3
  %s6 = scalar_select 0, %s5, %s3
  // Predicated region
  $region2: #{tpu_custom_call.1} parent=0 // pred_check
    _
  $region3: #{tpu_custom_call.1} parent=0 // pred_check_branch
    %8 = sbr.rel (0) target = $region5
  $region4: #{tpu_custom_call.1} parent=0 // pred_region
    _
  $region5: #{tpu_custom_call.1} parent=0 // pred_fallthru
    _
  // Predicated region
  $region6: #{tpu_custom_call.1} parent=0 // pred_check
    _
  $region7: #{tpu_custom_call.1} parent=0 // pred_check_branch
    %10 = sbr.rel (0) target = $region9
  $region8: #{tpu_custom_call.1} parent=0 // pred_region
    _
  $region9: #{tpu_custom_call.1} parent=0 // pred_fallthru
    _
  %p11 = scmp.eq.s32.totalorder 0, 0
  // Predicated region
  $region10: #{tpu_custom_call.1} parent=0 // pred_check
    %p12 = pneg %p11
  $region11: #{tpu_custom_call.1} parent=0 // pred_check_branch
    %14 = sbr.rel (%p12) target = $region13
  $region12: #{tpu_custom_call.1} parent=0 // pred_region
    %vm15 = vcmask 7168
    %16 = vst.msk [vmem:[#allocation2] sm:$0xff] %vm15, -inf
    %17 = vst.msk [vmem:[#allocation3] sm:$0xff] %vm15, 0.0
    %18 = vst.msk [vmem:[#allocation4] sm:$0xff] %vm15, 0.0
  $region13: #{tpu_custom_call.1} parent=0 // pred_fallthru
    _
  %v19 = vld [vmem:[%s0] sm:$0xff]
  %v20 = vld [vmem:[%s1] sm:$0xff]
  %s21 = smul.u32 0, 128
  %v22 = vlaneseq
  %v23 = vand.u32 %v22, 127
  %v24 = vstv %s21
  %v25 = vadd.s32 %v24, %v23
  %v26 = vld [vmem:[#allocation2] sm:$0xff]
  %27 = vmax.xlane.f32.xlu0 %v19
  %v28 = vpop.xlane.xlu0 %27
  %v29 = vmax.f32 %v26, %v28
  %v30 = vsub.f32 %v26, %v29
  %v31 = vmul.f32 %v30, 1.442695
  %v32 = vpow.pop %v31
  %v33 = vld [vmem:[#allocation3] sm:$0xff]
  %v34 = vmul.f32 %v32, %v33
  %36 = vset.pattern.permute.xlu0 0
  %37 = vperm.xlu0 %36, %v29
  %v38 = vpop.permute.xlu0 %37
  %v40 = vsub.f32 %v19, %v38
  %v41 = vmul.f32 %v40, 1.442695
  %v42 = vpow.pop %v41
  %43 = vadd.xlane.f32.xlu0 %v42
  %v44 = vpop.xlane.xlu0 %43
  %v45 = vadd.f32 %v34, %v44
  %vm46 = vcmask 7168
  %47 = vst.msk [vmem:[#allocation3] sm:$0xff] %vm46, %v45
  %48 = vst.msk [vmem:[#allocation2] sm:$0xff] %vm46, %v29
  %v49 = vld [vmem:[#allocation4] sm:$0xff]
  %50 = vset.pattern.permute.xlu0 0
  %51 = vperm.xlu0 %50, %v20
  %v52 = vpop.permute.xlu0 %51
  %vm53 = vcmp.eq.s32.totalorder %v25, %v52
  %v54 = vsel %vm53, %v19, 0.0
  %55 = vadd.xlane.f32.xlu0 %v54
  %v56 = vpop.xlane.xlu0 %55
  %v57 = vadd.f32 %v49, %v56
  %58 = vst.msk [vmem:[#allocation4] sm:$0xff] %vm46, %v57
  // Predicated region
  $region14: #{tpu_custom_call.1} parent=0 // pred_check
    %p59 = pneg %p11
  $region15: #{tpu_custom_call.1} parent=0 // pred_check_branch
    %61 = sbr.rel (%p59) target = $region17
  $region16: #{tpu_custom_call.1} parent=0 // pred_region
    %v62 = vld [vmem:[#allocation2] sm:$0xff]
    %v63 = vld [vmem:[#allocation3] sm:$0xff]
    %v64 = vlog2.pop %v63
    %v65 = vmul.f32 %v64, 0.6931472
    %v66 = vadd.f32 %v62, %v65
    %vm67 = vcmp.ne.s32.totalorder %v20, 4294967196
    %v68 = vld [vmem:[#allocation4] sm:$0xff]
    %v69 = vsub.f32 %v66, %v68
    %v70 = vsel %vm67, %v69, 0.0
    %71 = vst.msk [vmem:[%s2] sm:$0xff] %vm46, %v70
  $region17: #{tpu_custom_call.1} parent=0 // pred_fallthru
    _
  // Predicated region
  $region18: #{tpu_custom_call.1} parent=0 // pred_check
    _
  $region19: #{tpu_custom_call.1} parent=0 // pred_check_branch
    %73 = sbr.rel (0) target = $region21
  $region20: #{tpu_custom_call.1} parent=0 // pred_region
    _
  $region21: #{tpu_custom_call.1} parent=0 // pred_fallthru
    _
  // Predicated region
  $region22: #{tpu_custom_call.1} parent=0 // pred_check
    _
  $region23: #{tpu_custom_call.1} parent=0 // pred_check_branch
    %75 = sbr.rel (0) target = $region25
  $region24: #{tpu_custom_call.1} parent=0 // pred_region
    _
  $region25: #{tpu_custom_call.1} parent=0 // pred_fallthru
    _

</llo_original>
